<compile_context>
chip_gen: v5e
topology: v5e:2x2
jax: 0.10.0
libtpu: 0.0.40
codegen_flags: <defaults>
</compile_context>

<pallas_src>
import functools

import jax
import jax.numpy as jnp
from jax import lax
from jax.experimental import pallas as pl
from jax.experimental.pallas import tpu as pltpu

_LANES = 128
_SUBLANES = 8
_CHUNK_ROWS = 1024                    # in-kernel streaming chunk (512 KiB f32)
_MAX_BLOCK_BYTES = 4 * 1024 * 1024    # ~4 MiB HBM->VMEM block per input
_VMEM_LIMIT = 32 * 1024 * 1024        # explicit so the tile is legal on v5e too


def _cdiv(a: int, b: int) -> int:
    return -(-a // b)


def _round_up(a: int, b: int) -> int:
    return _cdiv(a, b) * b


def _abs_pow(v, p: float):
    """|v|**p.  VPU multiply chains for small integer p, EUP pow otherwise."""
    if p == 1.0:
        return jnp.abs(v)
    if p == 2.0:
        return v * v
    if float(p).is_integer() and 0 < p <= 8:
        ip = int(p)
        if ip % 2 == 0:                 # even p: no abs needed
            sq = v * v
            out = sq
            for _ in range(ip // 2 - 1):
                out = out * sq
            return out
        a = jnp.abs(v)
        out = a
        for _ in range(ip - 1):
            out = out * a
        return out
    return jnp.abs(v) ** p              # generic p: log/exp on the EUP


def _lp_loss_kernel(x_ref, y_ref, acc_ref, *, p: float, rows: int,
                    block_rows: int, chunk_rows: int, k_per_split: int,
                    needs_mask: bool):
    """Accumulate per-lane partial sums of |x - y|^p and |y|^p for one block.

    x_ref / y_ref: (1, block_rows, 128) input blocks of one example.
    acc_ref:       (1, 1, 2, 8, 128) resident output accumulators
                   ([..., 0, :, :] = diff partials, [..., 1, :, :] = y partials).
    """
    s = pl.program_id(0)                 # row-block range split (TC split)
    k = pl.program_id(2)                 # row-block index within the split

    @pl.when(k == 0)
    def _():
        acc_ref[...] = jnp.zeros_like(acc_ref)

    kb = s * k_per_split + k             # absolute row-block index (traced)
    limit = rows - kb * block_rows       # valid rows in this block (may be <=0)
    n_chunks = block_rows // chunk_rows

    def chunk_sums(c, valid_rows):
        start = pl.multiple_of(c * chunk_rows, chunk_rows)
        x = x_ref[0, pl.ds(start, chunk_rows), :].astype(jnp.float32)
        y = y_ref[0, pl.ds(start, chunk_rows), :].astype(jnp.float32)
        dp = _abs_pow(x - y, p)
        yp = _abs_pow(y, p)
        if valid_rows is not None:       # mask rows past the valid extent
            row = lax.broadcasted_iota(jnp.int32, (chunk_rows, _LANES), 0)
            keep = row < valid_rows
            dp = jnp.where(keep, dp, 0.0)
            yp = jnp.where(keep, yp, 0.0)
        # Reduce over the leading register-block axis only (pure VPU adds).
        dp = jnp.sum(dp.reshape(chunk_rows // _SUBLANES, _SUBLANES, _LANES), axis=0)
        yp = jnp.sum(yp.reshape(chunk_rows // _SUBLANES, _SUBLANES, _LANES), axis=0)
        return dp, yp

    zero = jnp.zeros((_SUBLANES, _LANES), jnp.float32)

    def accumulate(masked):
        def body(c, carry):
            da, ya = carry
            dp, yp = chunk_sums(c, (limit - c * chunk_rows) if masked else None)
            return da + dp, ya + yp

        if masked:
            # Skip chunks that are entirely past the valid extent.
            n_iter = jnp.clip((limit + chunk_rows - 1) // chunk_rows, 0, n_chunks)
        else:
            n_iter = n_chunks
        da, ya = lax.fori_loop(0, n_iter, body, (zero, zero))
        acc_ref[0, 0, 0] += da
        acc_ref[0, 0, 1] += ya

    if not needs_mask:
        accumulate(masked=False)
    else:
        # Only the last (partial / out-of-range) row-block pays for the mask.
        pl.when(limit >= block_rows)(lambda: accumulate(masked=False))
        pl.when(limit < block_rows)(lambda: accumulate(masked=True))


@functools.partial(jax.jit, static_argnames="p")
def _rel_lp_loss(x: jax.Array, y: jax.Array, *, p: float = 2.0) -> jax.Array:
    """Relative Lp loss: mean over batch of ||x - y||_p / ||y||_p (flattened)."""
    assert x.shape == y.shape
    b = x.shape[0]
    xv = x.reshape(b, -1)
    yv = y.reshape(b, -1)
    n = xv.shape[1]

    # Lane-align the flattened features.  For n % 128 == 0 (FourCastNet-style
    # C*H*W) this is a free reshape: no copy, no padding.  Only tiny or
    # non-lane-aligned shapes fall back to a zero pad (norm preserving).
    n_pad = _round_up(n, _LANES)
    rows = n_pad // _LANES
    if rows < _CHUNK_ROWS:
        rows = _round_up(rows, _SUBLANES)
        n_pad = rows * _LANES
    if n_pad != n:
        # TODO(synk): a wrapper-side tail reduction would avoid this copy for
        # large non-128-aligned inputs; real FourCastNet shapes never hit it.
        xv = jnp.pad(xv, ((0, 0), (0, n_pad - n)))
        yv = jnp.pad(yv, ((0, 0), (0, n_pad - n)))

    xs = xv.reshape(b, rows, _LANES)
    ys = yv.reshape(b, rows, _LANES)

    itemsize = xs.dtype.itemsize
    max_block_rows = _MAX_BLOCK_BYTES // (_LANES * itemsize)  # 8192 f32 / 16384 bf16
    if rows >= _CHUNK_ROWS:
        block_rows = min(max_block_rows, (rows // _CHUNK_ROWS) * _CHUNK_ROWS)
    else:
        block_rows = rows                       # single, full-extent block
    chunk_rows = min(_CHUNK_ROWS, block_rows)
    k_blocks = _cdiv(rows, block_rows)

    # With B == 1 the batch axis cannot shard across v7x's two TensorCores;
    # split the row-block range on a leading parallel axis instead.
    num_splits = 2 if (b == 1 and k_blocks >= 2) else 1
    k_per_split = _cdiv(k_blocks, num_splits)
    needs_mask = (rows % block_rows != 0) or (num_splits * k_per_split != k_blocks)

    def in_map(s, bi, kk):
        kb = s * k_per_split + kk
        if num_splits > 1:
            kb = jnp.minimum(kb, k_blocks - 1)  # clamp fully out-of-range blocks
        return (bi, kb, 0)

    kernel = functools.partial(
        _lp_loss_kernel, p=p, rows=rows, block_rows=block_rows,
        chunk_rows=chunk_rows, k_per_split=k_per_split, needs_mask=needs_mask)

    elems = b * n
    eup_p = not (p in (1.0, 2.0) or (float(p).is_integer() and p <= 8))
    parts = pl.pallas_call(
        kernel,
        out_shape=jax.ShapeDtypeStruct(
            (num_splits, b, 2, _SUBLANES, _LANES), jnp.float32),
        grid_spec=pltpu.PrefetchScalarGridSpec(
            num_scalar_prefetch=0,
            grid=(num_splits, b, k_per_split),
            in_specs=[
                pl.BlockSpec((1, block_rows, _LANES), in_map),
                pl.BlockSpec((1, block_rows, _LANES), in_map),
            ],
            out_specs=pl.BlockSpec(
                (1, 1, 2, _SUBLANES, _LANES),
                lambda s, bi, kk: (s, bi, 0, 0, 0)),
        ),
        compiler_params=pltpu.CompilerParams(
            dimension_semantics=("parallel", "parallel", "arbitrary"),
            vmem_limit_bytes=_VMEM_LIMIT,
        ),
        cost_estimate=pl.CostEstimate(
            flops=6 * elems,
            transcendentals=4 * elems if eup_p else 0,
            bytes_accessed=2 * xs.size * itemsize
            + num_splits * b * 2 * _SUBLANES * _LANES * 4,
        ),
    )(xs, ys)

    # Tiny finalize in plain JAX: lane/sublane/split reduce, p-th root, ratio, mean.
    sums = jnp.sum(parts, axis=(0, 3, 4))       # (b, 2)
    diff_sum, y_sum = sums[:, 0], sums[:, 1]
    if p == 2.0:
        diff_norm = jnp.sqrt(diff_sum)
        y_norm = jnp.sqrt(y_sum)
    elif p == 1.0:
        diff_norm, y_norm = diff_sum, y_sum
    else:
        inv_p = 1.0 / p
        diff_norm = diff_sum ** inv_p
        y_norm = y_sum ** inv_p
    # Matches the PyTorch reference: no epsilon guard if ||y||_p == 0.
    return jnp.mean(diff_norm / y_norm)


class LpLoss:
    """JAX/Pallas port of the FourCastNet LpLoss module (forward only)."""

    def __init__(self, d: float = 2.0, p: float = 2.0):
        assert p > 0.0
        self.p = p

    def __call__(self, invar, pred_outvar, true_outvar, lambda_weighting, step):
        losses = {}
        for key in pred_outvar:
            losses[key] = _rel_lp_loss(pred_outvar[key], true_outvar[key], p=self.p)
        return losses


if __name__ == "__main__":
    key = jax.random.PRNGKey(0)
    keys = jax.random.split(key, 8)

    def ref_rel(x, y, p):
        b = x.shape[0]
        xv = x.reshape(b, -1).astype(jnp.float32)
        yv = y.reshape(b, -1).astype(jnp.float32)
        dn = jnp.sum(jnp.abs(xv - yv) ** p, axis=1) ** (1.0 / p)
        yn = jnp.sum(jnp.abs(yv) ** p, axis=1) ** (1.0 / p)
        return jnp.mean(dn / yn)

    def check(x, y, p, rtol=1e-4, atol=1e-6):
        got = jax.block_until_ready(_rel_lp_loss(x, y, p=p))
        want = ref_rel(x, y, p)
        assert jnp.allclose(got, want, rtol=rtol, atol=atol), (p, x.shape, got, want)

    # 1) Module-style call, [B, C, H, W] with a lane-aligned feature count
    #    (no padding, no masking path).
    B, C, H, W = 2, 4, 16, 16
    pred = jax.random.normal(keys[0], (B, C, H, W), dtype=jnp.float32)
    true = jax.random.normal(keys[1], (B, C, H, W), dtype=jnp.float32)
    loss_fn = LpLoss(p=2.0)
    losses = loss_fn({}, {"u": pred}, {"u": true}, {}, 0)
    got = jax.block_until_ready(losses["u"])
    want = ref_rel(pred, true, 2.0)
    assert jnp.allclose(got, want, rtol=1e-4, atol=1e-6), (got, want)

    # 2) Non-lane-aligned feature count -> tiny zero-pad fallback path.
    check(jax.random.normal(keys[2], (2, 3, 10, 10), dtype=jnp.float32),
          jax.random.normal(keys[3], (2, 3, 10, 10), dtype=jnp.float32), 2.0)

    # 3) B == 1 with multiple row-blocks -> 2-way TensorCore split + in-kernel
    #    masking of the partial last block (no padding copy).
    check(jax.random.normal(keys[4], (1, 3, 64, 1024), dtype=jnp.float32),
          jax.random.normal(keys[5], (1, 3, 64, 1024), dtype=jnp.float32), 2.0)

    # 4) bf16 inputs stream at native packing (f32 cast happens in-kernel).
    check(jax.random.normal(keys[6], (2, 4, 24, 128), dtype=jnp.bfloat16),
          jax.random.normal(keys[7], (2, 4, 24, 128), dtype=jnp.bfloat16),
          2.0, rtol=1e-3)

    # 5) Integer p uses a VPU multiply chain; non-integer p uses the EUP path.
    check(pred, true, 3.0)
    check(pred, true, 2.5)

    print("KERNEL_OK")
</pallas_src>

<mosaic_0001>
module attributes {stable_mosaic.version = 11 : i64} {
  func.func @_lp_loss_kernel(%arg0: i32, %arg1: i32, %arg2: i32, %arg3: memref<1x8x128xf32, #tpu.memory_space<vmem>>, %arg4: memref<1x8x128xf32, #tpu.memory_space<vmem>>, %arg5: memref<1x1x2x8x128xf32, #tpu.memory_space<vmem>>) attributes {dimension_semantics = [#tpu.dimension_semantics<parallel>, #tpu.dimension_semantics<parallel>, #tpu.dimension_semantics<arbitrary>], iteration_bounds = array<i64: 1, 2, 1>, scalar_prefetch = 0 : i64, scratch_operands = 0 : i64, tpu.core_type = #tpu.core_type<tc>, window_params = [{transform_indices = @transform_0, window_bounds = array<i64: 1, 8, 128>}, {transform_indices = @transform_1, window_bounds = array<i64: 1, 8, 128>}, {transform_indices = @transform_2, window_bounds = array<i64: 1, 1, 2, 8, 128>}]} {
    %c0_i32 = arith.constant 0 : i32
    %0 = arith.cmpi eq, %arg2, %c0_i32 : i32
    %1 = arith.extui %0 : i1 to i32
    %c0_i32_0 = arith.constant 0 : i32
    %2 = arith.cmpi ne, %1, %c0_i32_0 : i32
    scf.if %2 {
      %cst_26 = arith.constant 0.000000e+00 : f32
      %33 = vector.broadcast %cst_26 : f32 to vector<1x1x2x8x128xf32>
      %c0_27 = arith.constant 0 : index
      %c0_28 = arith.constant 0 : index
      %c0_29 = arith.constant 0 : index
      %c0_30 = arith.constant 0 : index
      %c0_31 = arith.constant 0 : index
      %34 = vector.load %arg5[%c0_27, %c0_28, %c0_29, %c0_30, %c0_31] : memref<1x1x2x8x128xf32, #tpu.memory_space<vmem>>, vector<1x1x2x8x128xf32>
      tpu.vector_store %arg5[%c0_27, %c0_28, %c0_29, %c0_30, %c0_31], %33 {strides = array<i32>} : memref<1x1x2x8x128xf32, #tpu.memory_space<vmem>>, vector<1x1x2x8x128xf32>,
    } else {
    }
    %cst = arith.constant 0.000000e+00 : f32
    %3 = vector.broadcast %cst : f32 to vector<8x128xf32>
    %c0_i32_1 = arith.constant 0 : i32
    %c8_i32 = arith.constant 8 : i32
    %4 = arith.muli %c0_i32_1, %c8_i32 : i32
    %5 = tpu.assume_multiple %4, 8 : i32
    %c0 = arith.constant 0 : index
    %6 = arith.index_cast %5 : i32 to index
    %c0_2 = arith.constant 0 : index
    %7 = vector.load %arg3[%c0, %6, %c0_2] : memref<1x8x128xf32, #tpu.memory_space<vmem>>, vector<1x8x128xf32>
    %8 = vector.shape_cast %7 : vector<1x8x128xf32> to vector<8x128xf32>
    %c0_3 = arith.constant 0 : index
    %9 = arith.index_cast %5 : i32 to index
    %c0_4 = arith.constant 0 : index
    %10 = vector.load %arg4[%c0_3, %9, %c0_4] : memref<1x8x128xf32, #tpu.memory_space<vmem>>, vector<1x8x128xf32>
    %11 = vector.shape_cast %10 : vector<1x8x128xf32> to vector<8x128xf32>
    %12 = arith.subf %8, %11 : vector<8x128xf32>
    %13 = arith.mulf %12, %12 : vector<8x128xf32>
    %14 = arith.mulf %11, %11 : vector<8x128xf32>
    %15 = vector.shape_cast %13 : vector<8x128xf32> to vector<1x8x128xf32>
    %cst_5 = arith.constant dense<0.000000e+00> : vector<8x128xf32>
    %16 = vector.multi_reduction <add>, %15, %cst_5 [0] : vector<1x8x128xf32> to vector<8x128xf32>
    %17 = vector.shape_cast %14 : vector<8x128xf32> to vector<1x8x128xf32>
    %cst_6 = arith.constant dense<0.000000e+00> : vector<8x128xf32>
    %18 = vector.multi_reduction <add>, %17, %cst_6 [0] : vector<1x8x128xf32> to vector<8x128xf32>
    %19 = arith.addf %3, %16 : vector<8x128xf32>
    %20 = arith.addf %3, %18 : vector<8x128xf32>
    %c1_i32 = arith.constant 1 : i32
    %c0_7 = arith.constant 0 : index
    %c0_8 = arith.constant 0 : index
    %c0_9 = arith.constant 0 : index
    %c0_10 = arith.constant 0 : index
    %c0_11 = arith.constant 0 : index
    %21 = vector.load %arg5[%c0_7, %c0_8, %c0_9, %c0_10, %c0_11] : memref<1x1x2x8x128xf32, #tpu.memory_space<vmem>>, vector<1x1x1x8x128xf32>
    %22 = vector.shape_cast %21 : vector<1x1x1x8x128xf32> to vector<8x128xf32>
    %23 = arith.addf %22, %19 : vector<8x128xf32>
    %c0_12 = arith.constant 0 : index
    %c0_13 = arith.constant 0 : index
    %c0_14 = arith.constant 0 : index
    %c0_15 = arith.constant 0 : index
    %c0_16 = arith.constant 0 : index
    %24 = vector.load %arg5[%c0_12, %c0_13, %c0_14, %c0_15, %c0_16] : memref<1x1x2x8x128xf32, #tpu.memory_space<vmem>>, vector<1x1x1x8x128xf32>
    %25 = vector.shape_cast %24 : vector<1x1x1x8x128xf32> to vector<8x128xf32>
    %26 = vector.shape_cast %23 : vector<8x128xf32> to vector<1x1x1x8x128xf32>
    tpu.vector_store %arg5[%c0_12, %c0_13, %c0_14, %c0_15, %c0_16], %26 {strides = array<i32>} : memref<1x1x2x8x128xf32, #tpu.memory_space<vmem>>, vector<1x1x1x8x128xf32>,
    %c0_17 = arith.constant 0 : index
    %c0_18 = arith.constant 0 : index
    %c1 = arith.constant 1 : index
    %c0_19 = arith.constant 0 : index
    %c0_20 = arith.constant 0 : index
    %27 = vector.load %arg5[%c0_17, %c0_18, %c1, %c0_19, %c0_20] : memref<1x1x2x8x128xf32, #tpu.memory_space<vmem>>, vector<1x1x1x8x128xf32>
    %28 = vector.shape_cast %27 : vector<1x1x1x8x128xf32> to vector<8x128xf32>
    %29 = arith.addf %28, %20 : vector<8x128xf32>
    %c0_21 = arith.constant 0 : index
    %c0_22 = arith.constant 0 : index
    %c1_23 = arith.constant 1 : index
    %c0_24 = arith.constant 0 : index
    %c0_25 = arith.constant 0 : index
    %30 = vector.load %arg5[%c0_21, %c0_22, %c1_23, %c0_24, %c0_25] : memref<1x1x2x8x128xf32, #tpu.memory_space<vmem>>, vector<1x1x1x8x128xf32>
    %31 = vector.shape_cast %30 : vector<1x1x1x8x128xf32> to vector<8x128xf32>
    %32 = vector.shape_cast %29 : vector<8x128xf32> to vector<1x1x1x8x128xf32>
    tpu.vector_store %arg5[%c0_21, %c0_22, %c1_23, %c0_24, %c0_25], %32 {strides = array<i32>} : memref<1x1x2x8x128xf32, #tpu.memory_space<vmem>>, vector<1x1x1x8x128xf32>,
    return
  }
  func.func @transform_0(%arg0: i32, %arg1: i32, %arg2: i32) -> (i32, i32, i32) {
    %c1_i32 = arith.constant 1 : i32
    %0 = arith.muli %arg0, %c1_i32 : i32
    %1 = arith.addi %0, %arg2 : i32
    %c0_i32 = arith.constant 0 : i32
    %c0_i32_0 = arith.constant 0 : i32
    return %arg1, %1, %c0_i32 : i32, i32, i32
  }
  func.func @transform_1(%arg0: i32, %arg1: i32, %arg2: i32) -> (i32, i32, i32) {
    %c1_i32 = arith.constant 1 : i32
    %0 = arith.muli %arg0, %c1_i32 : i32
    %1 = arith.addi %0, %arg2 : i32
    %c0_i32 = arith.constant 0 : i32
    %c0_i32_0 = arith.constant 0 : i32
    return %arg1, %1, %c0_i32 : i32, i32, i32
  }
  func.func @transform_2(%arg0: i32, %arg1: i32, %arg2: i32) -> (i32, i32, i32, i32, i32) {
    %c0_i32 = arith.constant 0 : i32
    %c0_i32_0 = arith.constant 0 : i32
    %c0_i32_1 = arith.constant 0 : i32
    %c0_i32_2 = arith.constant 0 : i32
    return %arg0, %arg1, %c0_i32, %c0_i32_0, %c0_i32_1 : i32, i32, i32, i32, i32
  }
}

</mosaic_0001>

<llo_original>
// kernel: _rel_lp_loss.1
$region0: #{_rel_lp_loss.1}
  #allocation0 [shape = 'u32[]', space=smem, size = 0x4, offset = 0x4, fixed_abs, tag = 'smem constant byte address 0x4 - core index']
  #allocation1 [shape = 'u32[72,128]{1,0:T(1,128)}', space=vmem, size = 0x9000, scoped, tag = 'internal scratch']
  %s0 = inlined_call_operand.vmem [shape: f32[2,8,128], index: 0, kind: input, shape index: {}]
  %s1 = inlined_call_operand.vmem [shape: f32[2,8,128], index: 1, kind: input, shape index: {}]
  %s2 = inlined_call_operand.vmem [shape: f32[1,2,2,8,128], index: 2, kind: output, shape index: {}]
  %s3 = sld [smem:[#allocation0]]
  $region45: #{_rel_lp_loss.1} parent=0
    _
  %s5 = ssub.s32 1, %s3
  %s6 = scalar_select 0, %s5, %s3
  loop: start=0, step=1, limit=4
  $region2: #{_rel_lp_loss.1} parent=0 // loop_pre_header
    _
  $region3: #{_rel_lp_loss.1} parent=0 // loop_header
    %s8 = sphi 0, %s12
    %p9 = scmp.ge.s32.totalorder %s8, 4
    %s15 = sphi 0, %s34
    %s16 = sphi 0, %s30
    %s17 = sphi 0, %s26
    %s18 = sphi 0, %s15
    %s19 = sphi 0, %s16
    %s20 = sphi 0, %s17
    %s21 = sphi 0, %s18
    %s22 = sphi 0, %s19
    %s23 = sphi 0, %s20
    %s41 = sphi 0, %s43
    %s44 = sphi 0, %s41
    %s45 = sphi 0, %s44
    %s61 = sphi 0, %s45
    %s71 = sphi 0, %s73
    %s74 = sphi 0, %s71
    %s75 = sphi 0, %s74
    %s91 = sphi 0, %s75
    %s99 = sphi 0, %s101
    %s102 = sphi 0, %s99
    %s103 = sphi 0, %s102
    %s119 = sphi 0, %s103
  $region4: #{_rel_lp_loss.1} parent=0 // loop_header_branch
    %11 = sbr.rel (%p9) target = $region8
  $region5: #{_rel_lp_loss.1} parent=0 // loop_body
    %s13 = ssub.s32 %s8, 1
    %s14 = ssub.s32 %s8, 2
    %s24 = sadd.s32 1, %s17
    %p25 = scmp.ge.s32.totalorder %s24, 1
    %s26 = scalar_select %p25, 0, %s24
    %s27 = sadd.s32 1, %s16
    %s28 = scalar_select %p25, %s27, %s16
    %p29 = scmp.ge.s32.totalorder %s28, 2
    %s30 = scalar_select %p29, 0, %s28
    %s31 = sadd.s32 1, %s15
    %s32 = scalar_select %p29, %s31, %s15
    %p33 = scmp.ge.s32.totalorder %s32, 1
    %s34 = scalar_select %p33, 0, %s32
    %s35 = sadd.s32 %s15, %s17
    %s36 = sadd.s32 %s34, %s26
    %s37 = ssub.s32 %s16, %s30
    %s38 = ssub.s32 %s35, %s36
    %s39 = sor.u32 %s37, %s38
    %p40 = scmp.eq.s32.totalorder %s39, 0
    %s42 = sadd.s32 %s41, 1
    %s43 = scalar_select %p40, %s41, %s42
    %p46 = pneg %p40
    %p47 = scmp.eq.s32.totalorder %s8, 1
    %p48 = por %p46, %p47
    %p49 = scmp.ne.s32.totalorder %s41, %s44
    %p50 = scmp.eq.s32.totalorder %s8, 0
    %p51 = por %p49, %p50
    %p52 = scmp.ne.s32.totalorder %s41, %s44
    %p53 = scmp.eq.s32.totalorder %s13, 1
    %p54 = por %p52, %p53
    %p55 = scmp.ne.s32.totalorder %s44, %s45
    %p56 = scmp.eq.s32.totalorder %s13, 0
    %p57 = por %p55, %p56
    %p58 = scmp.ne.s32.totalorder %s44, %s45
    %p59 = scmp.eq.s32.totalorder %s14, 1
    %p60 = por %p58, %p59
    %p62 = scmp.ne.s32.totalorder %s45, %s61
    %p63 = scmp.eq.s32.totalorder %s14, 0
    %p64 = por %p62, %p63
    %s65 = sadd.s32 %s15, %s17
    %s66 = sadd.s32 %s34, %s26
    %s67 = ssub.s32 %s16, %s30
    %s68 = ssub.s32 %s65, %s66
    %s69 = sor.u32 %s67, %s68
    %p70 = scmp.eq.s32.totalorder %s69, 0
    %s72 = sadd.s32 %s71, 1
    %s73 = scalar_select %p70, %s71, %s72
    %p76 = pneg %p70
    %p77 = scmp.eq.s32.totalorder %s8, 1
    %p78 = por %p76, %p77
    %p79 = scmp.ne.s32.totalorder %s71, %s74
    %p80 = scmp.eq.s32.totalorder %s8, 0
    %p81 = por %p79, %p80
    %p82 = scmp.ne.s32.totalorder %s71, %s74
    %p83 = scmp.eq.s32.totalorder %s13, 1
    %p84 = por %p82, %p83
    %p85 = scmp.ne.s32.totalorder %s74, %s75
    %p86 = scmp.eq.s32.totalorder %s13, 0
    %p87 = por %p85, %p86
    %p88 = scmp.ne.s32.totalorder %s74, %s75
    %p89 = scmp.eq.s32.totalorder %s14, 1
    %p90 = por %p88, %p89
    %p92 = scmp.ne.s32.totalorder %s75, %s91
    %p93 = scmp.eq.s32.totalorder %s14, 0
    %p94 = por %p92, %p93
    %s95 = ssub.s32 %s15, %s34
    %s96 = ssub.s32 %s16, %s30
    %s97 = sor.u32 %s95, %s96
    %p98 = scmp.eq.s32.totalorder %s97, 0
    %s100 = sadd.s32 %s99, 1
    %s101 = scalar_select %p98, %s99, %s100
    %p104 = pneg %p98
    %p105 = scmp.eq.s32.totalorder %s8, 1
    %p106 = por %p104, %p105
    %p107 = scmp.ne.s32.totalorder %s99, %s102
    %p108 = scmp.eq.s32.totalorder %s8, 0
    %p109 = por %p107, %p108
    %p110 = scmp.ne.s32.totalorder %s99, %s102
    %p111 = scmp.eq.s32.totalorder %s13, 1
    %p112 = por %p110, %p111
    %p113 = scmp.ne.s32.totalorder %s102, %s103
    %p114 = scmp.eq.s32.totalorder %s13, 0
    %p115 = por %p113, %p114
    %p116 = scmp.ne.s32.totalorder %s102, %s103
    %p117 = scmp.eq.s32.totalorder %s14, 1
    %p118 = por %p116, %p117
    %p120 = scmp.ne.s32.totalorder %s103, %s119
    %p121 = scmp.eq.s32.totalorder %s14, 0
    %p122 = por %p120, %p121
    %p123 = scmp.le.s32.totalorder 1, %s8
    %p124 = scmp.lt.s32.totalorder %s8, 3
    %p125 = pnand %p123, %p124
    %p126 = pneg %p125
    // Predicated region
    $region9: #{_rel_lp_loss.1} parent=5 // pred_check
      _
    $region10: #{_rel_lp_loss.1} parent=5 // pred_check_branch
      %128 = sbr.rel (%p125) target = $region12
    $region11: #{_rel_lp_loss.1} parent=5 // pred_region
      %s129 = ssub.s32 %s8, 1
    $region12: #{_rel_lp_loss.1} parent=5 // pred_fallthru
      _
    %p130 = scmp.lt.s32.totalorder %s8, 2
    // Predicated region
    $region13: #{_rel_lp_loss.1} parent=5 // pred_check
      %p131 = pneg %p130
    $region14: #{_rel_lp_loss.1} parent=5 // pred_check_branch
      %133 = sbr.rel (%p131) target = $region16
    $region15: #{_rel_lp_loss.1} parent=5 // pred_region
      // Predicated region
      $region17: #{_rel_lp_loss.1} parent=15 // pred_check
        %p134 = pneg %p51
      $region18: #{_rel_lp_loss.1} parent=15 // pred_check_branch
        %136 = sbr.rel (%p134) target = $region20
      $region19: #{_rel_lp_loss.1} parent=15 // pred_region
        %s137 = sadd.s32 %s15, %s17
        %p138 = scmp.lt.s32.totalorder %s16, 1
        %s139 = scalar_select %p138, %s16, 1
        %p140 = scmp.lt.s32.totalorder %s137, 0
        %s141 = scalar_select %p140, %s137, 0
        %s142 = sadd.s32 %s141, %s139
        %s143 = smul.addr %s142, 8
        %s144 = scalar_lea.vmem %s0, %s143
        %s145 = sadd.s32 %s15, %s17
      $region20: #{_rel_lp_loss.1} parent=15 // pred_fallthru
        _
      // Predicated region
      $region21: #{_rel_lp_loss.1} parent=15 // pred_check
        %p146 = pneg %p81
      $region22: #{_rel_lp_loss.1} parent=15 // pred_check_branch
        %148 = sbr.rel (%p146) target = $region24
      $region23: #{_rel_lp_loss.1} parent=15 // pred_region
        %s149 = sadd.s32 %s15, %s17
        %p150 = scmp.lt.s32.totalorder %s16, 1
        %s151 = scalar_select %p150, %s16, 1
        %p152 = scmp.lt.s32.totalorder %s149, 0
        %s153 = scalar_select %p152, %s149, 0
        %s154 = sadd.s32 %s153, %s151
        %s155 = smul.addr %s154, 8
        %s156 = scalar_lea.vmem %s1, %s155
        %s157 = sadd.s32 %s15, %s17
      $region24: #{_rel_lp_loss.1} parent=15 // pred_fallthru
        _
    $region16: #{_rel_lp_loss.1} parent=5 // pred_fallthru
      _
    %p158 = scmp.le.s32.totalorder 1, %s8
    %p159 = scmp.lt.s32.totalorder %s8, 3
    %p160 = pnand %p158, %p159
    %p161 = pneg %p160
    // Predicated region
    $region25: #{_rel_lp_loss.1} parent=5 // pred_check
      _
    $region26: #{_rel_lp_loss.1} parent=5 // pred_check_branch
      %163 = sbr.rel (%p160) target = $region28
    $region27: #{_rel_lp_loss.1} parent=5 // pred_region
      %s164 = ssub.s32 %s8, 1
      %s165 = sadd.s32 %s18, %s20
      %p166 = scmp.lt.s32.totalorder %s19, 1
      %s167 = scalar_select %p166, %s19, 1
      %p168 = scmp.lt.s32.totalorder %s165, 0
      %s169 = scalar_select %p168, %s165, 0
      %s170 = sadd.s32 %s169, %s167
      %s171 = smul.addr %s170, 8
      %s172 = scalar_lea.vmem %s0, %s171
      %p173 = pneg %p57
      %p174 = pneg %p54
      %s175 = sadd.s32 %s18, %s20
      %p176 = scmp.lt.s32.totalorder %s19, 1
      %s177 = scalar_select %p176, %s19, 1
      %p178 = scmp.lt.s32.totalorder %s175, 0
      %s179 = scalar_select %p178, %s175, 0
      %s180 = sadd.s32 %s179, %s177
      %s181 = smul.addr %s180, 8
      %s182 = scalar_lea.vmem %s1, %s181
      %p183 = pneg %p87
      %p184 = pneg %p84
      %p185 = pneg %p115
      %p186 = pneg %p112
      %p187 = scmp.lt.s32.totalorder %s18, 0
      %s188 = scalar_select %p187, %s18, 0
      %p189 = scmp.lt.s32.totalorder %s19, 1
      %s190 = scalar_select %p189, %s19, 1
      %s191 = smul.addr %s190, 2
      %s192 = smul.addr %s188, 4
      %s193 = sadd.s32 %s191, %s192
      %s194 = smul.addr %s193, 8
      %s195 = scalar_lea.vmem %s2, %s194
      %s196 = sadd.s32 %s18, %s20
      %p197 = scmp.lt.s32.totalorder %s19, 1
      %s198 = scalar_select %p197, %s19, 1
      %p199 = scmp.lt.s32.totalorder %s196, 0
      %s200 = scalar_select %p199, %s196, 0
      %s201 = sadd.s32 %s200, %s198
      %s202 = smul.addr %s201, 8
      %s203 = scalar_lea.vmem %s0, %s202
      %s204 = sadd.s32 %s18, %s20
      %s205 = sadd.s32 %s18, %s20
      %p206 = scmp.lt.s32.totalorder %s19, 1
      %s207 = scalar_select %p206, %s19, 1
      %p208 = scmp.lt.s32.totalorder %s205, 0
      %s209 = scalar_select %p208, %s205, 0
      %s210 = sadd.s32 %s209, %s207
      %s211 = smul.addr %s210, 8
      %s212 = scalar_lea.vmem %s1, %s211
      %s213 = sadd.s32 %s18, %s20
      %p214 = scmp.lt.s32.totalorder %s18, 0
      %s215 = scalar_select %p214, %s18, 0
      %p216 = scmp.lt.s32.totalorder %s19, 1
      %s217 = scalar_select %p216, %s19, 1
      %s218 = smul.addr %s217, 2
      %s219 = smul.addr %s215, 4
      %s220 = sadd.s32 %s218, %s219
      %s221 = smul.addr %s220, 8
      %s222 = scalar_lea.vmem %s2, %s221
      %p223 = scmp.eq.s32.totalorder %s20, 0
      // Predicated region
      $region29: #{_rel_lp_loss.1} parent=27 // pred_check
        %p224 = pneg %p223
      $region30: #{_rel_lp_loss.1} parent=27 // pred_check_branch
        %226 = sbr.rel (%p224) target = $region32
      $region31: #{_rel_lp_loss.1} parent=27 // pred_region
        %227 = vst [vmem:[%s222] sm:$0xff] 0.0
        %228 = vst [vmem:[%s222 + $0x8] sm:$0xff] 0.0
      $region32: #{_rel_lp_loss.1} parent=27 // pred_fallthru
        _
      %v229 = vld [vmem:[%s203] sm:$0xff]
      %v230 = vld [vmem:[%s212] sm:$0xff]
      %v231 = vsub.f32 %v229, %v230
      %v232 = vmul.f32 %v231, %v231
      %v233 = vmul.f32 %v230, %v230
      %v234 = vadd.f32 %v232, 0.0
      %v235 = vadd.f32 %v233, 0.0
      %v236 = vadd.f32 %v234, 0.0
      %v237 = vadd.f32 %v235, 0.0
      %v238 = vld [vmem:[%s222] sm:$0xff]
      %v239 = vadd.f32 %v238, %v236
      %240 = vst [vmem:[%s222] sm:$0xff] %v239
      %s241 = scalar_lea.vmem %s222, 8
      %v242 = vld [vmem:[%s241] sm:$0xff]
      %v243 = vadd.f32 %v242, %v237
      %244 = vst [vmem:[%s241] sm:$0xff] %v243
      %p245 = scmp.lt.s32.totalorder %s18, 0
      %s246 = scalar_select %p245, %s18, 0
      %p247 = scmp.lt.s32.totalorder %s19, 1
      %s248 = scalar_select %p247, %s19, 1
      %s249 = smul.addr %s248, 2
      %s250 = smul.addr %s246, 4
      %s251 = sadd.s32 %s249, %s250
      %s252 = smul.addr %s251, 8
      %s253 = scalar_lea.vmem %s2, %s252
      // Predicated region
      $region33: #{_rel_lp_loss.1} parent=27 // pred_check
        %p254 = pneg %p112
      $region34: #{_rel_lp_loss.1} parent=27 // pred_check_branch
        %256 = sbr.rel (%p254) target = $region36
      $region35: #{_rel_lp_loss.1} parent=27 // pred_region
        _
      $region36: #{_rel_lp_loss.1} parent=27 // pred_fallthru
        _
    $region28: #{_rel_lp_loss.1} parent=5 // pred_fallthru
      _
    %p257 = scmp.le.s32.totalorder 2, %s8
    // Predicated region
    $region37: #{_rel_lp_loss.1} parent=5 // pred_check
      %p258 = pneg %p257
    $region38: #{_rel_lp_loss.1} parent=5 // pred_check_branch
      %260 = sbr.rel (%p258) target = $region40
    $region39: #{_rel_lp_loss.1} parent=5 // pred_region
      %s261 = ssub.s32 %s8, 2
      // Predicated region
      $region41: #{_rel_lp_loss.1} parent=39 // pred_check
        %p262 = pneg %p118
      $region42: #{_rel_lp_loss.1} parent=39 // pred_check_branch
        %264 = sbr.rel (%p262) target = $region44
      $region43: #{_rel_lp_loss.1} parent=39 // pred_region
        %p265 = scmp.lt.s32.totalorder %s21, 0
        %s266 = scalar_select %p265, %s21, 0
        %p267 = scmp.lt.s32.totalorder %s22, 1
        %s268 = scalar_select %p267, %s22, 1
        %s269 = smul.addr %s268, 2
        %s270 = smul.addr %s266, 4
        %s271 = sadd.s32 %s269, %s270
        %s272 = smul.addr %s271, 8
        %s273 = scalar_lea.vmem %s2, %s272
      $region44: #{_rel_lp_loss.1} parent=39 // pred_fallthru
        _
    $region40: #{_rel_lp_loss.1} parent=5 // pred_fallthru
      _
  $region6: #{_rel_lp_loss.1} parent=0 // loop_footer
    %s12 = sadd.s32 1, %s8
  $region7: #{_rel_lp_loss.1} parent=0 // loop_footer_branch
    %7 = sbr.rel target = $region3
  $region8: #{_rel_lp_loss.1} parent=0 // loop_exit
    _

</llo_original>
